<compile_context>
chip_gen: v7x
topology: tpu7x:2x2x1
jax: 0.10.0
libtpu: 0.0.40
codegen_flags: <defaults>
</compile_context>

<pallas_src>
import functools

import jax
import jax.numpy as jnp
import numpy as np
from jax import lax
from jax.experimental import pallas as pl
from jax.experimental.pallas import tpu as pltpu


def _basic_block_kernel(x_ref, coord_ref, w1_ref, b1_ref, w2_ref, b2_ref,
                        o_ref, *, H, W, nb, matmul_dtype):
    HW = H * W
    L = nb * HW
    x = x_ref[...]                         # (C, nb*HW) f32: conv input AND residual

    # Per-lane image coordinates (period HW along the concatenated lane axis).
    yy = coord_ref[0:1, :]                 # (1, L) int32 row index within image
    xx = coord_ref[1:2, :]                 # (1, L) int32 col index within image
    up    = (yy >= 1).astype(jnp.float32)
    down  = (yy <= H - 2).astype(jnp.float32)
    left  = (xx >= 1).astype(jnp.float32)
    right = (xx <= W - 2).astype(jnp.float32)
    vert = {-1: up, 0: None, 1: down}
    horz = {-1: left, 0: None, 1: right}

    # Precompute the 9 border masks once (shared by both im2col calls).
    tap_masks = []
    for dy in (-1, 0, 1):
        for dx in (-1, 0, 1):
            mv, mh = vert[dy], horz[dx]
            if mv is None and mh is None:
                tap_masks.append(None)
            elif mv is None:
                tap_masks.append(mh)
            elif mh is None:
                tap_masks.append(mv)
            else:
                tap_masks.append(mv * mh)

    def im2col(z):
        # (Cz, L) -> (9*Cz, L): tap-major, channel-minor rows, matching the
        # (Cout, 9*Cin) weight layout prepared by the wrapper.
        taps = []
        t = 0
        for dy in (-1, 0, 1):
            for dx in (-1, 0, 1):
                if dy == 0 and dx == 0:
                    taps.append(z)
                else:
                    d = dy * W + dx
                    # result[p] = z[(p + d) mod L]  (XLU lane rotation).  Any
                    # wrap across a row end, an image edge, or between the nb
                    # concatenated images lands only on masked lanes.
                    shifted = pltpu.roll(z, shift=(-d) % L, axis=1)
                    taps.append(shifted * tap_masks[t])   # (1,L) bcast over C
                t += 1
        return jnp.concatenate(taps, axis=0)

    # ---- conv1 (bn1 scale folded into weights): single wide MXU matmul ----
    acc1 = jnp.dot(w1_ref[...], im2col(x).astype(matmul_dtype),
                   preferred_element_type=jnp.float32)        # (P, L) f32
    mid = jnp.maximum(acc1 + b1_ref[...], 0.0)                # bias + relu (f32)

    # ---- conv2 (bn2 scale folded into weights) ----
    acc2 = jnp.dot(w2_ref[...], im2col(mid).astype(matmul_dtype),
                   preferred_element_type=jnp.float32)        # (P, L) f32

    # ---- bias + residual add + relu (f32 epilogue) ----
    o_ref[...] = jnp.maximum(acc2 + b2_ref[...] + x, 0.0).astype(o_ref.dtype)


def basic_block_pallas(x_nchw, w1, g1, beta1, m1, v1, w2, g2, beta2, m2, v2,
                       eps=1e-5, matmul_dtype=jnp.bfloat16, nb=None):
    """x_nchw: (N, C, H, W) float32.  w1, w2: (3, 3, Cin, Cout) HWIO."""
    N, C, H, W = x_nchw.shape
    P = w1.shape[-1]
    assert C == P, "stride=1 / downsample=None requires inplanes == planes"
    HW = H * W

    if nb is None:
        # Batch images per grid step, but keep >= 2 grid steps so both v7x
        # TensorCores get work on the "parallel" grid axis.
        target = max(1, N // 2)
        nb = max(d for d in range(1, target + 1) if N % d == 0)
    assert N % nb == 0
    L = nb * HW

    # Channels on sublanes, batch*spatial concatenated on the 128-lane axis
    # so each conv is ONE (P, 9C) @ (9C, nb*HW) MXU matmul per grid step.
    x = (x_nchw.astype(jnp.float32).reshape(N, C, HW)
         .transpose(1, 0, 2).reshape(C, N * HW))

    # Fold inference-mode BatchNorm into the conv: per-channel scale into the
    # weights (pre-cast to the matmul dtype -> no per-step weight cast, half
    # the weight DMA for bf16); bias kept separate in f32.
    inv1 = g1 / jnp.sqrt(v1 + eps)
    inv2 = g2 / jnp.sqrt(v2 + eps)
    w1_mat = (jnp.transpose(w1, (3, 0, 1, 2)).reshape(P, 9 * C)
              * inv1[:, None]).astype(matmul_dtype)
    w2_mat = (jnp.transpose(w2, (3, 0, 1, 2)).reshape(P, 9 * P)
              * inv2[:, None]).astype(matmul_dtype)
    b1 = (beta1 - m1 * inv1).reshape(P, 1).astype(jnp.float32)
    b2 = (beta2 - m2 * inv2).reshape(P, 1).astype(jnp.float32)

    # Tiny (2, nb*HW) int32 per-lane (row, col) coordinates; the 9 border
    # masks are built in-kernel from comparisons instead of DMA-ing a
    # sublane-padded (9, 1, HW) f32 mask slab.
    ys, xs = np.mgrid[0:H, 0:W]
    coords = jnp.asarray(np.stack([np.tile(ys.reshape(-1), nb),
                                   np.tile(xs.reshape(-1), nb)]).astype(np.int32))

    kernel = functools.partial(_basic_block_kernel, H=H, W=W, nb=nb,
                               matmul_dtype=matmul_dtype)
    full = lambda shape: pl.BlockSpec(shape, lambda i: (0,) * len(shape))

    out = pl.pallas_call(
        kernel,
        out_shape=jax.ShapeDtypeStruct((P, N * HW), jnp.float32),
        grid=(N // nb,),
        in_specs=[
            pl.BlockSpec((C, L), lambda i: (0, i)),   # x (also the residual)
            full((2, L)),                             # lane (row, col) coords
            full((P, 9 * C)), full((P, 1)),           # conv1 (+ folded bn1)
            full((P, 9 * P)), full((P, 1)),           # conv2 (+ folded bn2)
        ],
        out_specs=pl.BlockSpec((P, L), lambda i: (0, i)),
        compiler_params=pltpu.CompilerParams(
            dimension_semantics=("parallel",)),
    )(x, coords, w1_mat, b1, w2_mat, b2)

    # Free-ish rearrangement back to NCHW at the call boundary.
    return out.reshape(P, N, HW).transpose(1, 0, 2).reshape(N, P, H, W)


def basic_block_reference(x_nchw, w1, g1, beta1, m1, v1,
                          w2, g2, beta2, m2, v2, eps=1e-5):
    """Pure-JAX reference (NHWC convs)."""
    x = jnp.transpose(x_nchw, (0, 2, 3, 1)).astype(jnp.float32)
    dn = ('NHWC', 'HWIO', 'NHWC')

    def bn(y, g, b, m, v):
        return (y - m) / jnp.sqrt(v + eps) * g + b

    out = lax.conv_general_dilated(x, w1, (1, 1), 'SAME', dimension_numbers=dn)
    out = jax.nn.relu(bn(out, g1, beta1, m1, v1))
    out = lax.conv_general_dilated(out, w2, (1, 1), 'SAME', dimension_numbers=dn)
    out = bn(out, g2, beta2, m2, v2)
    out = jax.nn.relu(out + x)
    return jnp.transpose(out, (0, 3, 1, 2))


if __name__ == "__main__":
    # Small, deterministic config: inplanes = planes = 8, 16x16 spatial, N=4
    # (batched 2 images per grid step -> grid=(2,), both v7x TCs busy).
    N, C, H, W = 4, 8, 16, 16
    P = C  # expansion = 1, stride = 1, downsample = None

    key = jax.random.PRNGKey(0)
    ks = jax.random.split(key, 10)
    x = jax.random.normal(ks[0], (N, C, H, W), jnp.float32)

    # conv weights in HWIO layout (3, 3, Cin, Cout).
    w1 = jax.random.normal(ks[1], (3, 3, C, P), jnp.float32) * 0.1
    w2 = jax.random.normal(ks[2], (3, 3, P, P), jnp.float32) * 0.1
    # BatchNorm parameters (affine=True) + running stats, deterministic.
    g1 = 1.0 + 0.1 * jax.random.normal(ks[3], (P,), jnp.float32)
    beta1 = 0.1 * jax.random.normal(ks[4], (P,), jnp.float32)
    m1 = 0.1 * jax.random.normal(ks[5], (P,), jnp.float32)
    v1 = 1.0 + 0.1 * jax.nn.softplus(jax.random.normal(ks[6], (P,), jnp.float32))
    g2 = 1.0 + 0.1 * jax.random.normal(ks[7], (P,), jnp.float32)
    beta2 = 0.1 * jax.random.normal(ks[8], (P,), jnp.float32)
    m2 = 0.1 * jax.random.normal(ks[9], (P,), jnp.float32)
    v2 = jnp.ones((P,), jnp.float32) * 1.2

    args = (x, w1, g1, beta1, m1, v1, w2, g2, beta2, m2, v2)

    ref = jax.block_until_ready(basic_block_reference(*args))

    # f32 MXU path: tight check.
    out_f32 = jax.block_until_ready(
        basic_block_pallas(*args, matmul_dtype=jnp.float32))
    np.testing.assert_allclose(np.asarray(out_f32), np.asarray(ref),
                               rtol=1e-3, atol=1e-3)

    # Default bf16 MXU path (f32 accumulation + f32 epilogue): looser check —
    # expected bf16 quantization of weights/activations, not a bug.
    out_bf16 = jax.block_until_ready(basic_block_pallas(*args))
    np.testing.assert_allclose(np.asarray(out_bf16), np.asarray(ref),
                               rtol=5e-2, atol=5e-2)

    print("KERNEL_OK")
</pallas_src>

<mosaic_0001>
module attributes {stable_mosaic.version = 11 : i64} {
  func.func @_basic_block_kernel(%arg0: i32, %arg1: memref<8x512xf32, #tpu.memory_space<vmem>>, %arg2: memref<2x512xi32, #tpu.memory_space<vmem>>, %arg3: memref<8x72xf32, #tpu.memory_space<vmem>>, %arg4: memref<8x1xf32, #tpu.memory_space<vmem>>, %arg5: memref<8x72xf32, #tpu.memory_space<vmem>>, %arg6: memref<8x1xf32, #tpu.memory_space<vmem>>, %arg7: memref<8x512xf32, #tpu.memory_space<vmem>>) attributes {dimension_semantics = [#tpu.dimension_semantics<parallel>], iteration_bounds = array<i64: 2>, scalar_prefetch = 0 : i64, scratch_operands = 0 : i64, tpu.core_type = #tpu.core_type<tc>, window_params = [{transform_indices = @transform_0, window_bounds = array<i64: 8, 512>}, {pipeline_mode = #tpu.pipeline_mode<synchronous>, transform_indices = @transform_1, window_bounds = array<i64: 2, 512>}, {pipeline_mode = #tpu.pipeline_mode<synchronous>, transform_indices = @transform_2, window_bounds = array<i64: 8, 72>}, {pipeline_mode = #tpu.pipeline_mode<synchronous>, transform_indices = @transform_3, window_bounds = array<i64: 8, 1>}, {pipeline_mode = #tpu.pipeline_mode<synchronous>, transform_indices = @transform_4, window_bounds = array<i64: 8, 72>}, {pipeline_mode = #tpu.pipeline_mode<synchronous>, transform_indices = @transform_5, window_bounds = array<i64: 8, 1>}, {transform_indices = @transform_6, window_bounds = array<i64: 8, 512>}]} {
    %c0 = arith.constant 0 : index
    %c0_0 = arith.constant 0 : index
    %0 = vector.load %arg1[%c0, %c0_0] : memref<8x512xf32, #tpu.memory_space<vmem>>, vector<8x512xf32>
    %c0_1 = arith.constant 0 : index
    %c0_2 = arith.constant 0 : index
    %1 = vector.load %arg2[%c0_1, %c0_2] : memref<2x512xi32, #tpu.memory_space<vmem>>, vector<1x512xi32>
    %c1 = arith.constant 1 : index
    %c0_3 = arith.constant 0 : index
    %2 = vector.load %arg2[%c1, %c0_3] : memref<2x512xi32, #tpu.memory_space<vmem>>, vector<1x512xi32>
    %c1_i32 = arith.constant 1 : i32
    %3 = vector.broadcast %c1_i32 : i32 to vector<1x512xi32>
    %4 = arith.cmpi sge, %1, %3 : vector<1x512xi32>
    %5 = arith.extui %4 : vector<1x512xi1> to vector<1x512xi32>
    %6 = arith.sitofp %5 : vector<1x512xi32> to vector<1x512xf32>
    %c14_i32 = arith.constant 14 : i32
    %7 = vector.broadcast %c14_i32 : i32 to vector<1x512xi32>
    %8 = arith.cmpi sle, %1, %7 : vector<1x512xi32>
    %9 = arith.extui %8 : vector<1x512xi1> to vector<1x512xi32>
    %10 = arith.sitofp %9 : vector<1x512xi32> to vector<1x512xf32>
    %c1_i32_4 = arith.constant 1 : i32
    %11 = vector.broadcast %c1_i32_4 : i32 to vector<1x512xi32>
    %12 = arith.cmpi sge, %2, %11 : vector<1x512xi32>
    %13 = arith.extui %12 : vector<1x512xi1> to vector<1x512xi32>
    %14 = arith.sitofp %13 : vector<1x512xi32> to vector<1x512xf32>
    %c14_i32_5 = arith.constant 14 : i32
    %15 = vector.broadcast %c14_i32_5 : i32 to vector<1x512xi32>
    %16 = arith.cmpi sle, %2, %15 : vector<1x512xi32>
    %17 = arith.extui %16 : vector<1x512xi1> to vector<1x512xi32>
    %18 = arith.sitofp %17 : vector<1x512xi32> to vector<1x512xf32>
    %19 = arith.mulf %6, %14 : vector<1x512xf32>
    %20 = arith.mulf %6, %18 : vector<1x512xf32>
    %21 = arith.mulf %10, %14 : vector<1x512xf32>
    %22 = arith.mulf %10, %18 : vector<1x512xf32>
    %c0_6 = arith.constant 0 : index
    %c0_7 = arith.constant 0 : index
    %23 = vector.load %arg3[%c0_6, %c0_7] : memref<8x72xf32, #tpu.memory_space<vmem>>, vector<8x72xf32>
    %c17_i32 = arith.constant 17 : i32
    %24 = tpu.dynamic_rotate %0 by %c17_i32 dim 1 : vector<8x512xf32>, i32 -> vector<8x512xf32>
    %25 = vector.broadcast %19 : vector<1x512xf32> to vector<8x512xf32>
    %26 = arith.mulf %24, %25 : vector<8x512xf32>
    %c16_i32 = arith.constant 16 : i32
    %27 = tpu.dynamic_rotate %0 by %c16_i32 dim 1 : vector<8x512xf32>, i32 -> vector<8x512xf32>
    %28 = vector.broadcast %6 : vector<1x512xf32> to vector<8x512xf32>
    %29 = arith.mulf %27, %28 : vector<8x512xf32>
    %c15_i32 = arith.constant 15 : i32
    %30 = tpu.dynamic_rotate %0 by %c15_i32 dim 1 : vector<8x512xf32>, i32 -> vector<8x512xf32>
    %31 = vector.broadcast %20 : vector<1x512xf32> to vector<8x512xf32>
    %32 = arith.mulf %30, %31 : vector<8x512xf32>
    %c1_i32_8 = arith.constant 1 : i32
    %33 = tpu.dynamic_rotate %0 by %c1_i32_8 dim 1 : vector<8x512xf32>, i32 -> vector<8x512xf32>
    %34 = vector.broadcast %14 : vector<1x512xf32> to vector<8x512xf32>
    %35 = arith.mulf %33, %34 : vector<8x512xf32>
    %c511_i32 = arith.constant 511 : i32
    %36 = tpu.dynamic_rotate %0 by %c511_i32 dim 1 : vector<8x512xf32>, i32 -> vector<8x512xf32>
    %37 = vector.broadcast %18 : vector<1x512xf32> to vector<8x512xf32>
    %38 = arith.mulf %36, %37 : vector<8x512xf32>
    %c497_i32 = arith.constant 497 : i32
    %39 = tpu.dynamic_rotate %0 by %c497_i32 dim 1 : vector<8x512xf32>, i32 -> vector<8x512xf32>
    %40 = vector.broadcast %21 : vector<1x512xf32> to vector<8x512xf32>
    %41 = arith.mulf %39, %40 : vector<8x512xf32>
    %c496_i32 = arith.constant 496 : i32
    %42 = tpu.dynamic_rotate %0 by %c496_i32 dim 1 : vector<8x512xf32>, i32 -> vector<8x512xf32>
    %43 = vector.broadcast %10 : vector<1x512xf32> to vector<8x512xf32>
    %44 = arith.mulf %42, %43 : vector<8x512xf32>
    %c495_i32 = arith.constant 495 : i32
    %45 = tpu.dynamic_rotate %0 by %c495_i32 dim 1 : vector<8x512xf32>, i32 -> vector<8x512xf32>
    %46 = vector.broadcast %22 : vector<1x512xf32> to vector<8x512xf32>
    %47 = arith.mulf %45, %46 : vector<8x512xf32>
    %48 = tpu.concatenate %26, %29, %32, %35, %0, %38, %41, %44, %47 in 0 : vector<8x512xf32>, vector<8x512xf32>, vector<8x512xf32>, vector<8x512xf32>, vector<8x512xf32>, vector<8x512xf32>, vector<8x512xf32>, vector<8x512xf32>, vector<8x512xf32> -> vector<72x512xf32>
    %cst = arith.constant dense<0.000000e+00> : vector<8x512xf32>
    %49 = tpu.matmul %23, %48, %cst {dimension_numbers = #tpu.dot_dimension_numbers<[1], [0], [0], [1], [0, 0, 1, 1], [], []>} : vector<8x72xf32>, vector<72x512xf32>, vector<8x512xf32> -> vector<8x512xf32>
    %c0_9 = arith.constant 0 : index
    %c0_10 = arith.constant 0 : index
    %50 = vector.load %arg4[%c0_9, %c0_10] : memref<8x1xf32, #tpu.memory_space<vmem>>, vector<8x1xf32>
    %51 = vector.broadcast %50 : vector<8x1xf32> to vector<8x512xf32>
    %52 = arith.addf %49, %51 : vector<8x512xf32>
    %cst_11 = arith.constant 0.000000e+00 : f32
    %53 = vector.broadcast %cst_11 : f32 to vector<8x512xf32>
    %54 = arith.maximumf %52, %53 : vector<8x512xf32>
    %c0_12 = arith.constant 0 : index
    %c0_13 = arith.constant 0 : index
    %55 = vector.load %arg5[%c0_12, %c0_13] : memref<8x72xf32, #tpu.memory_space<vmem>>, vector<8x72xf32>
    %c17_i32_14 = arith.constant 17 : i32
    %56 = tpu.dynamic_rotate %54 by %c17_i32_14 dim 1 : vector<8x512xf32>, i32 -> vector<8x512xf32>
    %57 = vector.broadcast %19 : vector<1x512xf32> to vector<8x512xf32>
    %58 = arith.mulf %56, %57 : vector<8x512xf32>
    %c16_i32_15 = arith.constant 16 : i32
    %59 = tpu.dynamic_rotate %54 by %c16_i32_15 dim 1 : vector<8x512xf32>, i32 -> vector<8x512xf32>
    %60 = vector.broadcast %6 : vector<1x512xf32> to vector<8x512xf32>
    %61 = arith.mulf %59, %60 : vector<8x512xf32>
    %c15_i32_16 = arith.constant 15 : i32
    %62 = tpu.dynamic_rotate %54 by %c15_i32_16 dim 1 : vector<8x512xf32>, i32 -> vector<8x512xf32>
    %63 = vector.broadcast %20 : vector<1x512xf32> to vector<8x512xf32>
    %64 = arith.mulf %62, %63 : vector<8x512xf32>
    %c1_i32_17 = arith.constant 1 : i32
    %65 = tpu.dynamic_rotate %54 by %c1_i32_17 dim 1 : vector<8x512xf32>, i32 -> vector<8x512xf32>
    %66 = vector.broadcast %14 : vector<1x512xf32> to vector<8x512xf32>
    %67 = arith.mulf %65, %66 : vector<8x512xf32>
    %c511_i32_18 = arith.constant 511 : i32
    %68 = tpu.dynamic_rotate %54 by %c511_i32_18 dim 1 : vector<8x512xf32>, i32 -> vector<8x512xf32>
    %69 = vector.broadcast %18 : vector<1x512xf32> to vector<8x512xf32>
    %70 = arith.mulf %68, %69 : vector<8x512xf32>
    %c497_i32_19 = arith.constant 497 : i32
    %71 = tpu.dynamic_rotate %54 by %c497_i32_19 dim 1 : vector<8x512xf32>, i32 -> vector<8x512xf32>
    %72 = vector.broadcast %21 : vector<1x512xf32> to vector<8x512xf32>
    %73 = arith.mulf %71, %72 : vector<8x512xf32>
    %c496_i32_20 = arith.constant 496 : i32
    %74 = tpu.dynamic_rotate %54 by %c496_i32_20 dim 1 : vector<8x512xf32>, i32 -> vector<8x512xf32>
    %75 = vector.broadcast %10 : vector<1x512xf32> to vector<8x512xf32>
    %76 = arith.mulf %74, %75 : vector<8x512xf32>
    %c495_i32_21 = arith.constant 495 : i32
    %77 = tpu.dynamic_rotate %54 by %c495_i32_21 dim 1 : vector<8x512xf32>, i32 -> vector<8x512xf32>
    %78 = vector.broadcast %22 : vector<1x512xf32> to vector<8x512xf32>
    %79 = arith.mulf %77, %78 : vector<8x512xf32>
    %80 = tpu.concatenate %58, %61, %64, %67, %54, %70, %73, %76, %79 in 0 : vector<8x512xf32>, vector<8x512xf32>, vector<8x512xf32>, vector<8x512xf32>, vector<8x512xf32>, vector<8x512xf32>, vector<8x512xf32>, vector<8x512xf32>, vector<8x512xf32> -> vector<72x512xf32>
    %cst_22 = arith.constant dense<0.000000e+00> : vector<8x512xf32>
    %81 = tpu.matmul %55, %80, %cst_22 {dimension_numbers = #tpu.dot_dimension_numbers<[1], [0], [0], [1], [0, 0, 1, 1], [], []>} : vector<8x72xf32>, vector<72x512xf32>, vector<8x512xf32> -> vector<8x512xf32>
    %c0_23 = arith.constant 0 : index
    %c0_24 = arith.constant 0 : index
    %82 = vector.load %arg6[%c0_23, %c0_24] : memref<8x1xf32, #tpu.memory_space<vmem>>, vector<8x1xf32>
    %83 = vector.broadcast %82 : vector<8x1xf32> to vector<8x512xf32>
    %84 = arith.addf %81, %83 : vector<8x512xf32>
    %85 = arith.addf %84, %0 : vector<8x512xf32>
    %cst_25 = arith.constant 0.000000e+00 : f32
    %86 = vector.broadcast %cst_25 : f32 to vector<8x512xf32>
    %87 = arith.maximumf %85, %86 : vector<8x512xf32>
    %c0_26 = arith.constant 0 : index
    %c0_27 = arith.constant 0 : index
    %88 = vector.load %arg7[%c0_26, %c0_27] : memref<8x512xf32, #tpu.memory_space<vmem>>, vector<8x512xf32>
    tpu.vector_store %arg7[%c0_26, %c0_27], %87 {strides = array<i32>} : memref<8x512xf32, #tpu.memory_space<vmem>>, vector<8x512xf32>,
    return
  }
  func.func @transform_0(%arg0: i32) -> (i32, i32) {
    %c0_i32 = arith.constant 0 : i32
    %c0_i32_0 = arith.constant 0 : i32
    return %c0_i32, %arg0 : i32, i32
  }
  func.func @transform_1(%arg0: i32) -> (i32, i32) {
    %c0_i32 = arith.constant 0 : i32
    %c0_i32_0 = arith.constant 0 : i32
    %c0_i32_1 = arith.constant 0 : i32
    return %c0_i32, %c0_i32_0 : i32, i32
  }
  func.func @transform_2(%arg0: i32) -> (i32, i32) {
    %c0_i32 = arith.constant 0 : i32
    %c0_i32_0 = arith.constant 0 : i32
    %c0_i32_1 = arith.constant 0 : i32
    return %c0_i32, %c0_i32_0 : i32, i32
  }
  func.func @transform_3(%arg0: i32) -> (i32, i32) {
    %c0_i32 = arith.constant 0 : i32
    %c0_i32_0 = arith.constant 0 : i32
    %c0_i32_1 = arith.constant 0 : i32
    return %c0_i32, %c0_i32_0 : i32, i32
  }
  func.func @transform_4(%arg0: i32) -> (i32, i32) {
    %c0_i32 = arith.constant 0 : i32
    %c0_i32_0 = arith.constant 0 : i32
    %c0_i32_1 = arith.constant 0 : i32
    return %c0_i32, %c0_i32_0 : i32, i32
  }
  func.func @transform_5(%arg0: i32) -> (i32, i32) {
    %c0_i32 = arith.constant 0 : i32
    %c0_i32_0 = arith.constant 0 : i32
    %c0_i32_1 = arith.constant 0 : i32
    return %c0_i32, %c0_i32_0 : i32, i32
  }
  func.func @transform_6(%arg0: i32) -> (i32, i32) {
    %c0_i32 = arith.constant 0 : i32
    %c0_i32_0 = arith.constant 0 : i32
    return %c0_i32, %arg0 : i32, i32
  }
}

</mosaic_0001>

<llo_original>
// kernel: tpu_custom_call.1
$region0: #{tpu_custom_call.1}
  #allocation0 [shape = 'u32[]', space=smem, size = 0x4, offset = 0x4, fixed_abs, tag = 'smem constant byte address 0x4 - core index']
  #allocation1 [shape = 'u32[144,128]{1,0:T(1,128)}', space=vmem, size = 0x12000, scoped, tag = 'internal scratch']
  %s0 = inlined_call_operand.hbm [shape: f32[8,1024], index: 0, kind: input, shape index: {}]
  %s1 = inlined_call_operand.vmem [shape: s32[2,512], index: 1, kind: input, shape index: {}]
  %s2 = inlined_call_operand.vmem [shape: f32[8,72], index: 2, kind: input, shape index: {}]
  %s3 = inlined_call_operand.vmem [shape: f32[8,1], index: 3, kind: input, shape index: {}]
  %s4 = inlined_call_operand.vmem [shape: f32[8,72], index: 4, kind: input, shape index: {}]
  %s5 = inlined_call_operand.vmem [shape: f32[8,1], index: 5, kind: input, shape index: {}]
  %s6 = inlined_call_operand.hbm [shape: f32[8,1024], index: 6, kind: output, shape index: {}]
  %s7 = sld [smem:[#allocation0]]
  $region61: #{tpu_custom_call.1} parent=0
    _
  %s9 = ssub.s32 1, %s7
  %s10 = scalar_select 0, %s9, %s7
  $region1: #{tpu_custom_call.1} parent=0
    #allocation2 [shape = 'u8[32768]{0}', space=vmem, size = 0x8000, scoped, tag = 'input window, operand 0']
    #allocation3 [shape = 's32[2]{0}', space=sflag, size = 0x8, scoped, tag = 'scoped memory for tpu_custom_call.1']
    #allocation4 [shape = 's32[2]{0}', space=sflag, size = 0x8, scoped, tag = 'scoped memory for tpu_custom_call.1']
    #allocation5 [shape = 'u8[32768]{0}', space=vmem, size = 0x8000, scoped, tag = 'output window, operand 0']
    %11 = vsyncpa [#allocation3], 0
    %s12 = scalar_lea.sflag [#allocation3], 1
    %13 = vsyncpa %s12, 0
    %14 = vsyncpa [#allocation4], 0
    %s15 = scalar_lea.sflag [#allocation4], 1
    %16 = vsyncpa %s15, 0
    loop: start=0, step=1, limit=4
    $region2: #{tpu_custom_call.1} parent=1 // loop_pre_header
      _
    $region3: #{tpu_custom_call.1} parent=1 // loop_header
      %s18 = sphi 0, %s22
      %p19 = scmp.ge.s32.totalorder %s18, 4
      %s28 = sphi 0, %s30
      %s31 = sphi 0, %s28
      %s32 = sphi 0, %s31
      %s48 = sphi 0, %s32
      %s52 = sphi 0, %s52
      %s54 = sphi 0, %s52
      %s55 = sphi 0, %s54
      %s69 = sphi 0, %s55
      %s73 = sphi 0, %s73
      %s75 = sphi 0, %s73
      %s76 = sphi 0, %s75
      %s90 = sphi 0, %s76
      %s94 = sphi 0, %s94
      %s96 = sphi 0, %s94
      %s97 = sphi 0, %s96
      %s111 = sphi 0, %s97
      %s115 = sphi 0, %s115
      %s117 = sphi 0, %s115
      %s118 = sphi 0, %s117
      %s132 = sphi 0, %s118
      %s136 = sphi 0, %s136
      %s138 = sphi 0, %s136
      %s139 = sphi 0, %s138
      %s153 = sphi 0, %s139
      %s159 = sphi 0, %s161
      %s162 = sphi 0, %s159
      %s163 = sphi 0, %s162
      %s179 = sphi 0, %s163
    $region4: #{tpu_custom_call.1} parent=1 // loop_header_branch
      %21 = sbr.rel (%p19) target = $region8
    $region5: #{tpu_custom_call.1} parent=1 // loop_body
      %s23 = ssub.s32 %s18, 1
      %s24 = ssub.s32 %s18, 2
      %s25 = sadd.s32 %s18, 1
      %s26 = ssub.s32 %s18, %s25
      %p27 = scmp.eq.s32.totalorder %s26, 0
      %s29 = sadd.s32 %s28, 1
      %s30 = scalar_select %p27, %s28, %s29
      %p33 = pneg %p27
      %p34 = scmp.eq.s32.totalorder %s18, 1
      %p35 = por %p33, %p34
      %p36 = scmp.ne.s32.totalorder %s28, %s31
      %p37 = scmp.eq.s32.totalorder %s18, 0
      %p38 = por %p36, %p37
      %p39 = scmp.ne.s32.totalorder %s28, %s31
      %p40 = scmp.eq.s32.totalorder %s23, 1
      %p41 = por %p39, %p40
      %p42 = scmp.ne.s32.totalorder %s31, %s32
      %p43 = scmp.eq.s32.totalorder %s23, 0
      %p44 = por %p42, %p43
      %p45 = scmp.ne.s32.totalorder %s31, %s32
      %p46 = scmp.eq.s32.totalorder %s24, 1
      %p47 = por %p45, %p46
      %p49 = scmp.ne.s32.totalorder %s32, %s48
      %p50 = scmp.eq.s32.totalorder %s24, 0
      %p51 = por %p49, %p50
      %s53 = sadd.s32 %s52, 1
      %p56 = scmp.eq.s32.totalorder %s18, 1
      %p57 = scmp.ne.s32.totalorder %s52, %s54
      %p58 = scmp.eq.s32.totalorder %s18, 0
      %p59 = por %p57, %p58
      %p60 = scmp.ne.s32.totalorder %s52, %s54
      %p61 = scmp.eq.s32.totalorder %s23, 1
      %p62 = por %p60, %p61
      %p63 = scmp.ne.s32.totalorder %s54, %s55
      %p64 = scmp.eq.s32.totalorder %s23, 0
      %p65 = por %p63, %p64
      %p66 = scmp.ne.s32.totalorder %s54, %s55
      %p67 = scmp.eq.s32.totalorder %s24, 1
      %p68 = por %p66, %p67
      %p70 = scmp.ne.s32.totalorder %s55, %s69
      %p71 = scmp.eq.s32.totalorder %s24, 0
      %p72 = por %p70, %p71
      %s74 = sadd.s32 %s73, 1
      %p77 = scmp.eq.s32.totalorder %s18, 1
      %p78 = scmp.ne.s32.totalorder %s73, %s75
      %p79 = scmp.eq.s32.totalorder %s18, 0
      %p80 = por %p78, %p79
      %p81 = scmp.ne.s32.totalorder %s73, %s75
      %p82 = scmp.eq.s32.totalorder %s23, 1
      %p83 = por %p81, %p82
      %p84 = scmp.ne.s32.totalorder %s75, %s76
      %p85 = scmp.eq.s32.totalorder %s23, 0
      %p86 = por %p84, %p85
      %p87 = scmp.ne.s32.totalorder %s75, %s76
      %p88 = scmp.eq.s32.totalorder %s24, 1
      %p89 = por %p87, %p88
      %p91 = scmp.ne.s32.totalorder %s76, %s90
      %p92 = scmp.eq.s32.totalorder %s24, 0
      %p93 = por %p91, %p92
      %s95 = sadd.s32 %s94, 1
      %p98 = scmp.eq.s32.totalorder %s18, 1
      %p99 = scmp.ne.s32.totalorder %s94, %s96
      %p100 = scmp.eq.s32.totalorder %s18, 0
      %p101 = por %p99, %p100
      %p102 = scmp.ne.s32.totalorder %s94, %s96
      %p103 = scmp.eq.s32.totalorder %s23, 1
      %p104 = por %p102, %p103
      %p105 = scmp.ne.s32.totalorder %s96, %s97
      %p106 = scmp.eq.s32.totalorder %s23, 0
      %p107 = por %p105, %p106
      %p108 = scmp.ne.s32.totalorder %s96, %s97
      %p109 = scmp.eq.s32.totalorder %s24, 1
      %p110 = por %p108, %p109
      %p112 = scmp.ne.s32.totalorder %s97, %s111
      %p113 = scmp.eq.s32.totalorder %s24, 0
      %p114 = por %p112, %p113
      %s116 = sadd.s32 %s115, 1
      %p119 = scmp.eq.s32.totalorder %s18, 1
      %p120 = scmp.ne.s32.totalorder %s115, %s117
      %p121 = scmp.eq.s32.totalorder %s18, 0
      %p122 = por %p120, %p121
      %p123 = scmp.ne.s32.totalorder %s115, %s117
      %p124 = scmp.eq.s32.totalorder %s23, 1
      %p125 = por %p123, %p124
      %p126 = scmp.ne.s32.totalorder %s117, %s118
      %p127 = scmp.eq.s32.totalorder %s23, 0
      %p128 = por %p126, %p127
      %p129 = scmp.ne.s32.totalorder %s117, %s118
      %p130 = scmp.eq.s32.totalorder %s24, 1
      %p131 = por %p129, %p130
      %p133 = scmp.ne.s32.totalorder %s118, %s132
      %p134 = scmp.eq.s32.totalorder %s24, 0
      %p135 = por %p133, %p134
      %s137 = sadd.s32 %s136, 1
      %p140 = scmp.eq.s32.totalorder %s18, 1
      %p141 = scmp.ne.s32.totalorder %s136, %s138
      %p142 = scmp.eq.s32.totalorder %s18, 0
      %p143 = por %p141, %p142
      %p144 = scmp.ne.s32.totalorder %s136, %s138
      %p145 = scmp.eq.s32.totalorder %s23, 1
      %p146 = por %p144, %p145
      %p147 = scmp.ne.s32.totalorder %s138, %s139
      %p148 = scmp.eq.s32.totalorder %s23, 0
      %p149 = por %p147, %p148
      %p150 = scmp.ne.s32.totalorder %s138, %s139
      %p151 = scmp.eq.s32.totalorder %s24, 1
      %p152 = por %p150, %p151
      %p154 = scmp.ne.s32.totalorder %s139, %s153
      %p155 = scmp.eq.s32.totalorder %s24, 0
      %p156 = por %p154, %p155
      %s157 = ssub.s32 %s18, %s25
      %p158 = scmp.eq.s32.totalorder %s157, 0
      %s160 = sadd.s32 %s159, 1
      %s161 = scalar_select %p158, %s159, %s160
      %p164 = pneg %p158
      %p165 = scmp.eq.s32.totalorder %s18, 1
      %p166 = por %p164, %p165
      %p167 = scmp.ne.s32.totalorder %s159, %s162
      %p168 = scmp.eq.s32.totalorder %s18, 0
      %p169 = por %p167, %p168
      %p170 = scmp.ne.s32.totalorder %s159, %s162
      %p171 = scmp.eq.s32.totalorder %s23, 1
      %p172 = por %p170, %p171
      %p173 = scmp.ne.s32.totalorder %s162, %s163
      %p174 = scmp.eq.s32.totalorder %s23, 0
      %p175 = por %p173, %p174
      %p176 = scmp.ne.s32.totalorder %s162, %s163
      %p177 = scmp.eq.s32.totalorder %s24, 1
      %p178 = por %p176, %p177
      %p180 = scmp.ne.s32.totalorder %s163, %s179
      %p181 = scmp.eq.s32.totalorder %s24, 0
      %p182 = por %p180, %p181
      %p183 = scmp.le.s32.totalorder 1, %s18
      %p184 = scmp.lt.s32.totalorder %s18, 3
      %p185 = pnand %p183, %p184
      %p186 = pneg %p185
      // Predicated region
      $region9: #{tpu_custom_call.1} parent=5 // pred_check
        _
      $region10: #{tpu_custom_call.1} parent=5 // pred_check_branch
        %188 = sbr.rel (%p185) target = $region12
      $region11: #{tpu_custom_call.1} parent=5 // pred_region
        %s189 = ssub.s32 %s18, 1
        // Predicated region
        $region13: #{tpu_custom_call.1} parent=11 // pred_check
          %p190 = pneg %p65
        $region14: #{tpu_custom_call.1} parent=11 // pred_check_branch
          %192 = sbr.rel (%p190) target = $region16
        $region15: #{tpu_custom_call.1} parent=11 // pred_region
          _
        $region16: #{tpu_custom_call.1} parent=11 // pred_fallthru
          _
        // Predicated region
        $region17: #{tpu_custom_call.1} parent=11 // pred_check
          %p193 = pneg %p86
        $region18: #{tpu_custom_call.1} parent=11 // pred_check_branch
          %195 = sbr.rel (%p193) target = $region20
        $region19: #{tpu_custom_call.1} parent=11 // pred_region
          _
        $region20: #{tpu_custom_call.1} parent=11 // pred_fallthru
          _
        // Predicated region
        $region21: #{tpu_custom_call.1} parent=11 // pred_check
          %p196 = pneg %p107
        $region22: #{tpu_custom_call.1} parent=11 // pred_check_branch
          %198 = sbr.rel (%p196) target = $region24
        $region23: #{tpu_custom_call.1} parent=11 // pred_region
          _
        $region24: #{tpu_custom_call.1} parent=11 // pred_fallthru
          _
        // Predicated region
        $region25: #{tpu_custom_call.1} parent=11 // pred_check
          %p199 = pneg %p128
        $region26: #{tpu_custom_call.1} parent=11 // pred_check_branch
          %201 = sbr.rel (%p199) target = $region28
        $region27: #{tpu_custom_call.1} parent=11 // pred_region
          _
        $region28: #{tpu_custom_call.1} parent=11 // pred_fallthru
          _
        // Predicated region
        $region29: #{tpu_custom_call.1} parent=11 // pred_check
          %p202 = pneg %p149
        $region30: #{tpu_custom_call.1} parent=11 // pred_check_branch
          %204 = sbr.rel (%p202) target = $region32
        $region31: #{tpu_custom_call.1} parent=11 // pred_region
          _
        $region32: #{tpu_custom_call.1} parent=11 // pred_fallthru
          _
      $region12: #{tpu_custom_call.1} parent=5 // pred_fallthru
        _
      %p205 = scmp.lt.s32.totalorder %s18, 2
      // Predicated region
      $region33: #{tpu_custom_call.1} parent=5 // pred_check
        %p206 = pneg %p205
      $region34: #{tpu_custom_call.1} parent=5 // pred_check_branch
        %208 = sbr.rel (%p206) target = $region36
      $region35: #{tpu_custom_call.1} parent=5 // pred_region
        // Predicated region
        $region37: #{tpu_custom_call.1} parent=35 // pred_check
          %p209 = pneg %p38
        $region38: #{tpu_custom_call.1} parent=35 // pred_check_branch
          %211 = sbr.rel (%p209) target = $region40
        $region39: #{tpu_custom_call.1} parent=35 // pred_region
          %s212 = sand.u32 %s28, 1
          %s213 = scalar_lea.sflag [#allocation3], %s212
          %s214 = sand.u32 %s28, 1
          %s215 = smul.addr %s214, 32
          %s216 = scalar_lea.vmem [#allocation2], %s215
          %s217 = smul.u32 4, %s18
          %s219 = ssub.s32 512, 512
          %220 = vsyncadd %s213, %s219
          %s221 = smul.addr %s217, 128
          %s222 = scalar_lea.hbm %s0, %s221
          %s224 = sshll.u32 %s216, 4
          %s225 = int_to_ptr.vmem [resolvable:$true] %s224
          %227 = dma.hbm_to_vmem [thread:$0]  %s222, 512, %s225, %s213
        $region40: #{tpu_custom_call.1} parent=35 // pred_fallthru
          _
      $region36: #{tpu_custom_call.1} parent=5 // pred_fallthru
        _
      %p228 = scmp.le.s32.totalorder 1, %s18
      %p229 = scmp.lt.s32.totalorder %s18, 3
      %p230 = pnand %p228, %p229
      %p231 = pneg %p230
      // Predicated region
      $region41: #{tpu_custom_call.1} parent=5 // pred_check
        _
      $region42: #{tpu_custom_call.1} parent=5 // pred_check_branch
        %233 = sbr.rel (%p230) target = $region44
      $region43: #{tpu_custom_call.1} parent=5 // pred_region
        %s234 = ssub.s32 %s18, 1
        %s235 = sand.u32 %s31, 1
        %s236 = scalar_lea.sflag [#allocation3], %s235
        %s237 = sand.u32 %s31, 1
        %s238 = smul.addr %s237, 32
        %s239 = scalar_lea.vmem [#allocation2], %s238
        // Predicated region
        $region45: #{tpu_custom_call.1} parent=43 // pred_check
          %p240 = pneg %p44
        $region46: #{tpu_custom_call.1} parent=43 // pred_check_branch
          %242 = sbr.rel (%p240) target = $region48
        $region47: #{tpu_custom_call.1} parent=43 // pred_region
          %243 = dma.done %s236, 512
        $region48: #{tpu_custom_call.1} parent=43 // pred_fallthru
          _
        %s244 = sand.u32 %s31, 1
        %s245 = scalar_lea.sflag [#allocation3], %s244
        %s246 = sand.u32 %s31, 1
        %s247 = smul.addr %s246, 32
        %s248 = scalar_lea.vmem [#allocation2], %s247
        %p249 = pneg %p44
        %p250 = pneg %p41
        %p251 = pneg %p65
        %p252 = pneg %p62
        %p253 = pneg %p86
        %p254 = pneg %p83
        %p255 = pneg %p107
        %p256 = pneg %p104
        %p257 = pneg %p128
        %p258 = pneg %p125
        %p259 = pneg %p149
        %p260 = pneg %p146
        %p261 = pneg %p175
        %p262 = pneg %p172
        %s263 = sand.u32 %s162, 1
        %s264 = scalar_lea.sflag [#allocation4], %s263
        %s265 = sand.u32 %s162, 1
        %s266 = smul.addr %s265, 32
        %s267 = scalar_lea.vmem [#allocation5], %s266
        %s268 = smul.u32 4, %s23
        %s269 = smul.u32 4, %s23
        %v270 = vld [vmem:[%s239] sm:$0xff]
        %v271 = vld [vmem:[%s239 + $0x8] sm:$0xff]
        %v272 = vld [vmem:[%s239 + $0x10] sm:$0xff]
        %v273 = vld [vmem:[%s239 + $0x18] sm:$0xff]
        %v274 = vld [vmem:[%s1] ss:$2 sm:$0xf]
        %s275 = scalar_lea.vmem %s1, 1
        %v276 = vld [vmem:[%s275] ss:$2 sm:$0xf]
        %vm277 = vcmp.ge.s32.totalorder %v274, 1
        %v278 = vsel %vm277, 1, 0
        %v279 = vcvt.s32.f32 %v278
        %vm280 = vcmp.le.s32.totalorder %v274, 14
        %v281 = vsel %vm280, 1, 0
        %v282 = vcvt.s32.f32 %v281
        %vm283 = vcmp.ge.s32.totalorder %v276, 1
        %v284 = vsel %vm283, 1, 0
        %v285 = vcvt.s32.f32 %v284
        %vm286 = vcmp.le.s32.totalorder %v276, 14
        %v287 = vsel %vm286, 1, 0
        %v288 = vcvt.s32.f32 %v287
        %v289 = vmul.f32 %v279, %v285
        %v290 = vmul.f32 %v279, %v288
        %v291 = vmul.f32 %v282, %v285
        %v292 = vmul.f32 %v282, %v288
        %v293 = vld [vmem:[%s2] sm:$0xff]
        %294 = vrot.lane.b32.xlu0 %v270, 17
        %v295 = vpop.permute.xlu0 %294
        %296 = vrot.lane.b32.xlu0 %v271, 17
        %v297 = vpop.permute.xlu0 %296
        %298 = vrot.lane.b32.xlu0 %v272, 17
        %v299 = vpop.permute.xlu0 %298
        %300 = vrot.lane.b32.xlu0 %v273, 17
        %v301 = vpop.permute.xlu0 %300
        %v302 = vlaneseq
        %v303 = vand.u32 %v302, 127
        %vm304 = vcmp.lt.s32.totalorder %v303, 17
        %v305 = vsel %vm304, %v299, %v301
        %v306 = vsel %vm304, %v297, %v299
        %v307 = vsel %vm304, %v295, %v297
        %v308 = vsel %vm304, %v301, %v295
        %v310 = vlaneseq
        %v311 = vshrl.u32 %v310, 7
        %v312 = vsub.s32 0, %v311
        %v313 = vrot.slane %v289, %v312
        %v314 = vlaneseq
        %v315 = vshrl.u32 %v314, 7
        %v316 = vsub.s32 1, %v315
        %v317 = vrot.slane %v289, %v316
        %v318 = vlaneseq
        %v319 = vshrl.u32 %v318, 7
        %v320 = vsub.s32 2, %v319
        %v321 = vrot.slane %v289, %v320
        %v322 = vlaneseq
        %v323 = vshrl.u32 %v322, 7
        %v324 = vsub.s32 3, %v323
        %v325 = vrot.slane %v289, %v324
        %v330 = vmul.f32 %v308, %v313
        %v331 = vmul.f32 %v307, %v317
        %v332 = vmul.f32 %v306, %v321
        %v333 = vmul.f32 %v305, %v325
        %334 = vrot.lane.b32.xlu0 %v270, 16
        %v335 = vpop.permute.xlu0 %334
        %336 = vrot.lane.b32.xlu0 %v271, 16
        %v337 = vpop.permute.xlu0 %336
        %338 = vrot.lane.b32.xlu0 %v272, 16
        %v339 = vpop.permute.xlu0 %338
        %340 = vrot.lane.b32.xlu0 %v273, 16
        %v341 = vpop.permute.xlu0 %340
        %vm342 = vcmp.lt.s32.totalorder %v303, 16
        %v343 = vsel %vm342, %v339, %v341
        %v344 = vsel %vm342, %v337, %v339
        %v345 = vsel %vm342, %v335, %v337
        %v346 = vsel %vm342, %v341, %v335
        %v348 = vlaneseq
        %v349 = vshrl.u32 %v348, 7
        %v350 = vsub.s32 0, %v349
        %v351 = vrot.slane %v279, %v350
        %v352 = vlaneseq
        %v353 = vshrl.u32 %v352, 7
        %v354 = vsub.s32 1, %v353
        %v355 = vrot.slane %v279, %v354
        %v356 = vlaneseq
        %v357 = vshrl.u32 %v356, 7
        %v358 = vsub.s32 2, %v357
        %v359 = vrot.slane %v279, %v358
        %v360 = vlaneseq
        %v361 = vshrl.u32 %v360, 7
        %v362 = vsub.s32 3, %v361
        %v363 = vrot.slane %v279, %v362
        %v368 = vmul.f32 %v346, %v351
        %v369 = vmul.f32 %v345, %v355
        %v370 = vmul.f32 %v344, %v359
        %v371 = vmul.f32 %v343, %v363
        %372 = vrot.lane.b32.xlu0 %v270, 15
        %v373 = vpop.permute.xlu0 %372
        %374 = vrot.lane.b32.xlu0 %v271, 15
        %v375 = vpop.permute.xlu0 %374
        %376 = vrot.lane.b32.xlu0 %v272, 15
        %v377 = vpop.permute.xlu0 %376
        %378 = vrot.lane.b32.xlu0 %v273, 15
        %v379 = vpop.permute.xlu0 %378
        %vm380 = vcmp.lt.s32.totalorder %v303, 15
        %v381 = vsel %vm380, %v377, %v379
        %v382 = vsel %vm380, %v375, %v377
        %v383 = vsel %vm380, %v373, %v375
        %v384 = vsel %vm380, %v379, %v373
        %v386 = vlaneseq
        %v387 = vshrl.u32 %v386, 7
        %v388 = vsub.s32 0, %v387
        %v389 = vrot.slane %v290, %v388
        %v390 = vlaneseq
        %v391 = vshrl.u32 %v390, 7
        %v392 = vsub.s32 1, %v391
        %v393 = vrot.slane %v290, %v392
        %v394 = vlaneseq
        %v395 = vshrl.u32 %v394, 7
        %v396 = vsub.s32 2, %v395
        %v397 = vrot.slane %v290, %v396
        %v398 = vlaneseq
        %v399 = vshrl.u32 %v398, 7
        %v400 = vsub.s32 3, %v399
        %v401 = vrot.slane %v290, %v400
        %v406 = vmul.f32 %v384, %v389
        %v407 = vmul.f32 %v383, %v393
        %v408 = vmul.f32 %v382, %v397
        %v409 = vmul.f32 %v381, %v401
        %410 = vrot.lane.b32.xlu0 %v270, 1
        %v411 = vpop.permute.xlu0 %410
        %412 = vrot.lane.b32.xlu0 %v271, 1
        %v413 = vpop.permute.xlu0 %412
        %414 = vrot.lane.b32.xlu0 %v272, 1
        %v415 = vpop.permute.xlu0 %414
        %416 = vrot.lane.b32.xlu0 %v273, 1
        %v417 = vpop.permute.xlu0 %416
        %vm418 = vcmp.lt.s32.totalorder %v303, 1
        %v419 = vsel %vm418, %v415, %v417
        %v420 = vsel %vm418, %v413, %v415
        %v421 = vsel %vm418, %v411, %v413
        %v422 = vsel %vm418, %v417, %v411
        %v424 = vlaneseq
        %v425 = vshrl.u32 %v424, 7
        %v426 = vsub.s32 0, %v425
        %v427 = vrot.slane %v285, %v426
        %v428 = vlaneseq
        %v429 = vshrl.u32 %v428, 7
        %v430 = vsub.s32 1, %v429
        %v431 = vrot.slane %v285, %v430
        %v432 = vlaneseq
        %v433 = vshrl.u32 %v432, 7
        %v434 = vsub.s32 2, %v433
        %v435 = vrot.slane %v285, %v434
        %v436 = vlaneseq
        %v437 = vshrl.u32 %v436, 7
        %v438 = vsub.s32 3, %v437
        %v439 = vrot.slane %v285, %v438
        %v444 = vmul.f32 %v422, %v427
        %v445 = vmul.f32 %v421, %v431
        %v446 = vmul.f32 %v420, %v435
        %v447 = vmul.f32 %v419, %v439
        %448 = vrot.lane.b32.xlu0 %v270, 127
        %v449 = vpop.permute.xlu0 %448
        %450 = vrot.lane.b32.xlu0 %v271, 127
        %v451 = vpop.permute.xlu0 %450
        %452 = vrot.lane.b32.xlu0 %v272, 127
        %v453 = vpop.permute.xlu0 %452
        %454 = vrot.lane.b32.xlu0 %v273, 127
        %v455 = vpop.permute.xlu0 %454
        %vm456 = vcmp.lt.s32.totalorder %v303, 127
        %v457 = vsel %vm456, %v453, %v455
        %v458 = vsel %vm456, %v451, %v453
        %v459 = vsel %vm456, %v449, %v451
        %v460 = vsel %vm456, %v455, %v449
        %v462 = vlaneseq
        %v463 = vshrl.u32 %v462, 7
        %v464 = vsub.s32 0, %v463
        %v465 = vrot.slane %v288, %v464
        %v466 = vlaneseq
        %v467 = vshrl.u32 %v466, 7
        %v468 = vsub.s32 1, %v467
        %v469 = vrot.slane %v288, %v468
        %v470 = vlaneseq
        %v471 = vshrl.u32 %v470, 7
        %v472 = vsub.s32 2, %v471
        %v473 = vrot.slane %v288, %v472
        %v474 = vlaneseq
        %v475 = vshrl.u32 %v474, 7
        %v476 = vsub.s32 3, %v475
        %v477 = vrot.slane %v288, %v476
        %v482 = vmul.f32 %v459, %v465
        %v483 = vmul.f32 %v458, %v469
        %v484 = vmul.f32 %v457, %v473
        %v485 = vmul.f32 %v460, %v477
        %486 = vrot.lane.b32.xlu0 %v270, 113
        %v487 = vpop.permute.xlu0 %486
        %488 = vrot.lane.b32.xlu0 %v271, 113
        %v489 = vpop.permute.xlu0 %488
        %490 = vrot.lane.b32.xlu0 %v272, 113
        %v491 = vpop.permute.xlu0 %490
        %492 = vrot.lane.b32.xlu0 %v273, 113
        %v493 = vpop.permute.xlu0 %492
        %vm494 = vcmp.lt.s32.totalorder %v303, 113
        %v495 = vsel %vm494, %v491, %v493
        %v496 = vsel %vm494, %v489, %v491
        %v497 = vsel %vm494, %v487, %v489
        %v498 = vsel %vm494, %v493, %v487
        %v500 = vlaneseq
        %v501 = vshrl.u32 %v500, 7
        %v502 = vsub.s32 0, %v501
        %v503 = vrot.slane %v291, %v502
        %v504 = vlaneseq
        %v505 = vshrl.u32 %v504, 7
        %v506 = vsub.s32 1, %v505
        %v507 = vrot.slane %v291, %v506
        %v508 = vlaneseq
        %v509 = vshrl.u32 %v508, 7
        %v510 = vsub.s32 2, %v509
        %v511 = vrot.slane %v291, %v510
        %v512 = vlaneseq
        %v513 = vshrl.u32 %v512, 7
        %v514 = vsub.s32 3, %v513
        %v515 = vrot.slane %v291, %v514
        %v520 = vmul.f32 %v497, %v503
        %v521 = vmul.f32 %v496, %v507
        %v522 = vmul.f32 %v495, %v511
        %v523 = vmul.f32 %v498, %v515
        %524 = vrot.lane.b32.xlu0 %v270, 112
        %v525 = vpop.permute.xlu0 %524
        %526 = vrot.lane.b32.xlu0 %v271, 112
        %v527 = vpop.permute.xlu0 %526
        %528 = vrot.lane.b32.xlu0 %v272, 112
        %v529 = vpop.permute.xlu0 %528
        %530 = vrot.lane.b32.xlu0 %v273, 112
        %v531 = vpop.permute.xlu0 %530
        %vm532 = vcmp.lt.s32.totalorder %v303, 112
        %v533 = vsel %vm532, %v529, %v531
        %v534 = vsel %vm532, %v527, %v529
        %v535 = vsel %vm532, %v525, %v527
        %v536 = vsel %vm532, %v531, %v525
        %v538 = vlaneseq
        %v539 = vshrl.u32 %v538, 7
        %v540 = vsub.s32 0, %v539
        %v541 = vrot.slane %v282, %v540
        %v542 = vlaneseq
        %v543 = vshrl.u32 %v542, 7
        %v544 = vsub.s32 1, %v543
        %v545 = vrot.slane %v282, %v544
        %v546 = vlaneseq
        %v547 = vshrl.u32 %v546, 7
        %v548 = vsub.s32 2, %v547
        %v549 = vrot.slane %v282, %v548
        %v550 = vlaneseq
        %v551 = vshrl.u32 %v550, 7
        %v552 = vsub.s32 3, %v551
        %v553 = vrot.slane %v282, %v552
        %v558 = vmul.f32 %v535, %v541
        %v559 = vmul.f32 %v534, %v545
        %v560 = vmul.f32 %v533, %v549
        %v561 = vmul.f32 %v536, %v553
        %562 = vrot.lane.b32.xlu0 %v270, 111
        %v563 = vpop.permute.xlu0 %562
        %564 = vrot.lane.b32.xlu0 %v271, 111
        %v565 = vpop.permute.xlu0 %564
        %566 = vrot.lane.b32.xlu0 %v272, 111
        %v567 = vpop.permute.xlu0 %566
        %568 = vrot.lane.b32.xlu0 %v273, 111
        %v569 = vpop.permute.xlu0 %568
        %vm570 = vcmp.lt.s32.totalorder %v303, 111
        %v571 = vsel %vm570, %v567, %v569
        %v572 = vsel %vm570, %v565, %v567
        %v573 = vsel %vm570, %v563, %v565
        %v574 = vsel %vm570, %v569, %v563
        %v576 = vlaneseq
        %v577 = vshrl.u32 %v576, 7
        %v578 = vsub.s32 0, %v577
        %v579 = vrot.slane %v292, %v578
        %v580 = vlaneseq
        %v581 = vshrl.u32 %v580, 7
        %v582 = vsub.s32 1, %v581
        %v583 = vrot.slane %v292, %v582
        %v584 = vlaneseq
        %v585 = vshrl.u32 %v584, 7
        %v586 = vsub.s32 2, %v585
        %v587 = vrot.slane %v292, %v586
        %v588 = vlaneseq
        %v589 = vshrl.u32 %v588, 7
        %v590 = vsub.s32 3, %v589
        %v591 = vrot.slane %v292, %v590
        %v596 = vmul.f32 %v573, %v579
        %v597 = vmul.f32 %v572, %v583
        %v598 = vmul.f32 %v571, %v587
        %v599 = vmul.f32 %v574, %v591
        %v600 = vld [vmem:[%s3] sm:$0xff]
        %602 = vset.pattern.permute.xlu0 0
        %603 = vperm.xlu0 %602, %v600
        %v604 = vpop.permute.xlu0 %603
        %vm606 = vcmask 588800
        %v608 = vsel %vm606, %v293, 0
        %610 = vmatprep.subr.mxu0 %v331
        %611 = vmatpush1.msra.mxu0 %v330
        %612 = vmatprep.subr.mxu0 %v369
        %613 = vmatpush1.msra.mxu0 %v368
        %614 = vmatprep.subr.mxu0 %v407
        %615 = vmatpush1.msra.mxu0 %v406
        %616 = vmatprep.subr.mxu0 %v445
        %617 = vmatpush1.msra.mxu0 %v444
        %618 = vmatprep.subr.mxu0 %v271
        %619 = vmatpush1.msra.mxu0 %v270
        %620 = vmatprep.subr.mxu0 %v483
        %621 = vmatpush1.msra.mxu0 %v482
        %622 = vmatprep.subr.mxu0 %v521
        %623 = vmatpush1.msra.mxu0 %v520
        %624 = vmatprep.subr.mxu0 %v559
        %625 = vmatpush1.msra.mxu0 %v558
        %626 = vmatprep.subr.mxu0 %v597
        %627 = vmatpush1.msra.mxu0 %v596
        %628 = vmatprep.subr.mxu0 0.0
        %629 = vmatpush1.msra.mxu0 0.0
        %630 = vmatprep.subr.mxu0 0.0
        %631 = vmatpush1.msra.mxu0 0.0
        %632 = vmatprep.subr.mxu0 0.0
        %633 = vmatpush1.msra.mxu0 0.0
        %634 = vmatprep.subr.mxu0 0.0
        %635 = vmatpush1.msra.mxu0 0.0
        %636 = vmatprep.subr.mxu0 0.0
        %637 = vmatpush1.msra.mxu0 0.0
        %638 = vmatprep.subr.mxu0 0.0
        %639 = vmatpush1.msra.mxu0 0.0
        %640 = vmatprep.subr.mxu0 0.0
        %641 = vmatpush1.msra.mxu0 0.0
        %642 = vmatprep.subr.mxu0 0.0
        %643 = vmatpush1.msra.mxu0 0.0
        %644 = vmatprep.subr.mxu0 0.0
        %645 = vmatpush1.msra.mxu0 0.0
        %646 = vmatprep.subr.mxu0 0.0
        %647 = vmatpush1.msra.mxu0 0.0
        %648 = vmatprep.subr.mxu0 0.0
        %649 = vmatpush1.msra.mxu0 0.0
        %650 = vmatprep.subr.mxu0 0.0
        %651 = vmatpush1.msra.mxu0 0.0
        %652 = vmatprep.subr.mxu0 0.0
        %653 = vmatpush1.msra.mxu0 0.0
        %654 = vmatprep.subr.mxu0 0.0
        %655 = vmatpush1.msra.mxu0 0.0
        %656 = vmatprep.subr.mxu0 0.0
        %657 = vmatpush1.msra.mxu0 0.0
        %658 = vmatprep.subr.mxu0 0.0
        %659 = vmatpush1.msra.mxu0 0.0
        %660 = vmatprep.subr.mxu0 0.0
        %661 = vmatpush1.msra.mxu0 0.0
        %662 = vmatprep.subr.mxu0 0.0
        %663 = vmatpush1.msra.mxu0 0.0
        %664 = vmatprep.subr.mxu0 0.0
        %665 = vmatpush1.msra.mxu0 0.0
        %666 = vmatprep.subr.mxu0 0.0
        %667 = vmatpush1.msra.mxu0 0.0
        %668 = vmatprep.subr.mxu0 0.0
        %669 = vmatpush1.msra.mxu0 0.0
        %670 = vmatprep.subr.mxu0 0.0
        %671 = vmatpush1.msra.mxu0 0.0
        %672 = vmatprep.subr.mxu0 0.0
        %673 = vmatpush1.msra.mxu0 0.0
        %674 = vmatprep.mubr.f32.mxu0 0.0
        %675 = vmatmul.mubr.f32.gmra.mrb[0].mxu0 %v608
        %v676 = vpop.f32.mrb[0].mxu0
        %v677 = vadd.f32 %v604, %v676
        %v678 = vpop.f32.mrb[0].mxu0
        %v679 = vadd.f32 %v604, %v678
        %680 = vdwg.mxu0
        %681 = vmatprep.subr.mxu0 %v333
        %682 = vmatpush1.msra.mxu0 %v332
        %683 = vmatprep.subr.mxu0 %v371
        %684 = vmatpush1.msra.mxu0 %v370
        %685 = vmatprep.subr.mxu0 %v409
        %686 = vmatpush1.msra.mxu0 %v408
        %687 = vmatprep.subr.mxu0 %v447
        %688 = vmatpush1.msra.mxu0 %v446
        %689 = vmatprep.subr.mxu0 %v273
        %690 = vmatpush1.msra.mxu0 %v272
        %691 = vmatprep.subr.mxu0 %v485
        %692 = vmatpush1.msra.mxu0 %v484
        %693 = vmatprep.subr.mxu0 %v523
        %694 = vmatpush1.msra.mxu0 %v522
        %695 = vmatprep.subr.mxu0 %v561
        %696 = vmatpush1.msra.mxu0 %v560
        %697 = vmatprep.subr.mxu0 %v599
        %698 = vmatpush1.msra.mxu0 %v598
        %699 = vmatprep.subr.mxu0 0.0
        %700 = vmatpush1.msra.mxu0 0.0
        %701 = vmatprep.subr.mxu0 0.0
        %702 = vmatpush1.msra.mxu0 0.0
        %703 = vmatprep.subr.mxu0 0.0
        %704 = vmatpush1.msra.mxu0 0.0
        %705 = vmatprep.subr.mxu0 0.0
        %706 = vmatpush1.msra.mxu0 0.0
        %707 = vmatprep.subr.mxu0 0.0
        %708 = vmatpush1.msra.mxu0 0.0
        %709 = vmatprep.subr.mxu0 0.0
        %710 = vmatpush1.msra.mxu0 0.0
        %711 = vmatprep.subr.mxu0 0.0
        %712 = vmatpush1.msra.mxu0 0.0
        %713 = vmatprep.subr.mxu0 0.0
        %714 = vmatpush1.msra.mxu0 0.0
        %715 = vmatprep.subr.mxu0 0.0
        %716 = vmatpush1.msra.mxu0 0.0
        %717 = vmatprep.subr.mxu0 0.0
        %718 = vmatpush1.msra.mxu0 0.0
        %719 = vmatprep.subr.mxu0 0.0
        %720 = vmatpush1.msra.mxu0 0.0
        %721 = vmatprep.subr.mxu0 0.0
        %722 = vmatpush1.msra.mxu0 0.0
        %723 = vmatprep.subr.mxu0 0.0
        %724 = vmatpush1.msra.mxu0 0.0
        %725 = vmatprep.subr.mxu0 0.0
        %726 = vmatpush1.msra.mxu0 0.0
        %727 = vmatprep.subr.mxu0 0.0
        %728 = vmatpush1.msra.mxu0 0.0
        %729 = vmatprep.subr.mxu0 0.0
        %730 = vmatpush1.msra.mxu0 0.0
        %731 = vmatprep.subr.mxu0 0.0
        %732 = vmatpush1.msra.mxu0 0.0
        %733 = vmatprep.subr.mxu0 0.0
        %734 = vmatpush1.msra.mxu0 0.0
        %735 = vmatprep.subr.mxu0 0.0
        %736 = vmatpush1.msra.mxu0 0.0
        %737 = vmatprep.subr.mxu0 0.0
        %738 = vmatpush1.msra.mxu0 0.0
        %739 = vmatprep.subr.mxu0 0.0
        %740 = vmatpush1.msra.mxu0 0.0
        %741 = vmatprep.subr.mxu0 0.0
        %742 = vmatpush1.msra.mxu0 0.0
        %743 = vmatprep.subr.mxu0 0.0
        %744 = vmatpush1.msra.mxu0 0.0
        %745 = vmatprep.mubr.f32.mxu0 0.0
        %746 = vmatmul.mubr.f32.gmra.mrb[0].mxu0 %v608
        %v747 = vpop.f32.mrb[0].mxu0
        %v748 = vadd.f32 %v604, %v747
        %v749 = vpop.f32.mrb[0].mxu0
        %v750 = vadd.f32 %v604, %v749
        %751 = vdwg.mxu0
        %v752 = vmax.f32 %v677, 0.0
        %v753 = vmax.f32 %v679, 0.0
        %v754 = vmax.f32 %v748, 0.0
        %v755 = vmax.f32 %v750, 0.0
        %v756 = vld [vmem:[%s4] sm:$0xff]
        %757 = vrot.lane.b32.xlu0 %v752, 17
        %v758 = vpop.permute.xlu0 %757
        %759 = vrot.lane.b32.xlu0 %v753, 17
        %v760 = vpop.permute.xlu0 %759
        %761 = vrot.lane.b32.xlu0 %v754, 17
        %v762 = vpop.permute.xlu0 %761
        %763 = vrot.lane.b32.xlu0 %v755, 17
        %v764 = vpop.permute.xlu0 %763
        %v765 = vsel %vm304, %v762, %v764
        %v766 = vsel %vm304, %v760, %v762
        %v767 = vsel %vm304, %v758, %v760
        %v768 = vsel %vm304, %v764, %v758
        %v769 = vmul.f32 %v768, %v313
        %v770 = vmul.f32 %v767, %v317
        %v771 = vmul.f32 %v766, %v321
        %v772 = vmul.f32 %v765, %v325
        %773 = vrot.lane.b32.xlu0 %v752, 16
        %v774 = vpop.permute.xlu0 %773
        %775 = vrot.lane.b32.xlu0 %v753, 16
        %v776 = vpop.permute.xlu0 %775
        %777 = vrot.lane.b32.xlu0 %v754, 16
        %v778 = vpop.permute.xlu0 %777
        %779 = vrot.lane.b32.xlu0 %v755, 16
        %v780 = vpop.permute.xlu0 %779
        %v781 = vsel %vm342, %v778, %v780
        %v782 = vsel %vm342, %v776, %v778
        %v783 = vsel %vm342, %v774, %v776
        %v784 = vsel %vm342, %v780, %v774
        %v785 = vmul.f32 %v784, %v351
        %v786 = vmul.f32 %v783, %v355
        %v787 = vmul.f32 %v782, %v359
        %v788 = vmul.f32 %v781, %v363
        %789 = vrot.lane.b32.xlu0 %v752, 15
        %v790 = vpop.permute.xlu0 %789
        %791 = vrot.lane.b32.xlu0 %v753, 15
        %v792 = vpop.permute.xlu0 %791
        %793 = vrot.lane.b32.xlu0 %v754, 15
        %v794 = vpop.permute.xlu0 %793
        %795 = vrot.lane.b32.xlu0 %v755, 15
        %v796 = vpop.permute.xlu0 %795
        %v797 = vsel %vm380, %v794, %v796
        %v798 = vsel %vm380, %v792, %v794
        %v799 = vsel %vm380, %v790, %v792
        %v800 = vsel %vm380, %v796, %v790
        %v801 = vmul.f32 %v800, %v389
        %v802 = vmul.f32 %v799, %v393
        %v803 = vmul.f32 %v798, %v397
        %v804 = vmul.f32 %v797, %v401
        %805 = vrot.lane.b32.xlu0 %v752, 1
        %v806 = vpop.permute.xlu0 %805
        %807 = vrot.lane.b32.xlu0 %v753, 1
        %v808 = vpop.permute.xlu0 %807
        %809 = vrot.lane.b32.xlu0 %v754, 1
        %v810 = vpop.permute.xlu0 %809
        %811 = vrot.lane.b32.xlu0 %v755, 1
        %v812 = vpop.permute.xlu0 %811
        %v813 = vsel %vm418, %v810, %v812
        %v814 = vsel %vm418, %v808, %v810
        %v815 = vsel %vm418, %v806, %v808
        %v816 = vsel %vm418, %v812, %v806
        %v817 = vmul.f32 %v816, %v427
        %v818 = vmul.f32 %v815, %v431
        %v819 = vmul.f32 %v814, %v435
        %v820 = vmul.f32 %v813, %v439
        %821 = vrot.lane.b32.xlu0 %v752, 127
        %v822 = vpop.permute.xlu0 %821
        %823 = vrot.lane.b32.xlu0 %v753, 127
        %v824 = vpop.permute.xlu0 %823
        %825 = vrot.lane.b32.xlu0 %v754, 127
        %v826 = vpop.permute.xlu0 %825
        %827 = vrot.lane.b32.xlu0 %v755, 127
        %v828 = vpop.permute.xlu0 %827
        %v829 = vsel %vm456, %v826, %v828
        %v830 = vsel %vm456, %v824, %v826
        %v831 = vsel %vm456, %v822, %v824
        %v832 = vsel %vm456, %v828, %v822
        %v833 = vmul.f32 %v831, %v465
        %v834 = vmul.f32 %v830, %v469
        %v835 = vmul.f32 %v829, %v473
        %v836 = vmul.f32 %v832, %v477
        %837 = vrot.lane.b32.xlu0 %v752, 113
        %v838 = vpop.permute.xlu0 %837
        %839 = vrot.lane.b32.xlu0 %v753, 113
        %v840 = vpop.permute.xlu0 %839
        %841 = vrot.lane.b32.xlu0 %v754, 113
        %v842 = vpop.permute.xlu0 %841
        %843 = vrot.lane.b32.xlu0 %v755, 113
        %v844 = vpop.permute.xlu0 %843
        %v845 = vsel %vm494, %v842, %v844
        %v846 = vsel %vm494, %v840, %v842
        %v847 = vsel %vm494, %v838, %v840
        %v848 = vsel %vm494, %v844, %v838
        %v849 = vmul.f32 %v847, %v503
        %v850 = vmul.f32 %v846, %v507
        %v851 = vmul.f32 %v845, %v511
        %v852 = vmul.f32 %v848, %v515
        %853 = vrot.lane.b32.xlu0 %v752, 112
        %v854 = vpop.permute.xlu0 %853
        %855 = vrot.lane.b32.xlu0 %v753, 112
        %v856 = vpop.permute.xlu0 %855
        %857 = vrot.lane.b32.xlu0 %v754, 112
        %v858 = vpop.permute.xlu0 %857
        %859 = vrot.lane.b32.xlu0 %v755, 112
        %v860 = vpop.permute.xlu0 %859
        %v861 = vsel %vm532, %v858, %v860
        %v862 = vsel %vm532, %v856, %v858
        %v863 = vsel %vm532, %v854, %v856
        %v864 = vsel %vm532, %v860, %v854
        %v865 = vmul.f32 %v863, %v541
        %v866 = vmul.f32 %v862, %v545
        %v867 = vmul.f32 %v861, %v549
        %v868 = vmul.f32 %v864, %v553
        %869 = vrot.lane.b32.xlu0 %v752, 111
        %v870 = vpop.permute.xlu0 %869
        %871 = vrot.lane.b32.xlu0 %v753, 111
        %v872 = vpop.permute.xlu0 %871
        %873 = vrot.lane.b32.xlu0 %v754, 111
        %v874 = vpop.permute.xlu0 %873
        %875 = vrot.lane.b32.xlu0 %v755, 111
        %v876 = vpop.permute.xlu0 %875
        %v877 = vsel %vm570, %v874, %v876
        %v878 = vsel %vm570, %v872, %v874
        %v879 = vsel %vm570, %v870, %v872
        %v880 = vsel %vm570, %v876, %v870
        %v881 = vmul.f32 %v879, %v579
        %v882 = vmul.f32 %v878, %v583
        %v883 = vmul.f32 %v877, %v587
        %v884 = vmul.f32 %v880, %v591
        %v885 = vld [vmem:[%s5] sm:$0xff]
        %887 = vset.pattern.permute.xlu0 0
        %888 = vperm.xlu0 %887, %v885
        %v889 = vpop.permute.xlu0 %888
        %v892 = vsel %vm606, %v756, 0
        %894 = vmatprep.subr.mxu0 %v770
        %895 = vmatpush1.msra.mxu0 %v769
        %896 = vmatprep.subr.mxu0 %v786
        %897 = vmatpush1.msra.mxu0 %v785
        %898 = vmatprep.subr.mxu0 %v802
        %899 = vmatpush1.msra.mxu0 %v801
        %900 = vmatprep.subr.mxu0 %v818
        %901 = vmatpush1.msra.mxu0 %v817
        %902 = vmatprep.subr.mxu0 %v753
        %903 = vmatpush1.msra.mxu0 %v752
        %904 = vmatprep.subr.mxu0 %v834
        %905 = vmatpush1.msra.mxu0 %v833
        %906 = vmatprep.subr.mxu0 %v850
        %907 = vmatpush1.msra.mxu0 %v849
        %908 = vmatprep.subr.mxu0 %v866
        %909 = vmatpush1.msra.mxu0 %v865
        %910 = vmatprep.subr.mxu0 %v882
        %911 = vmatpush1.msra.mxu0 %v881
        %912 = vmatprep.subr.mxu0 0.0
        %913 = vmatpush1.msra.mxu0 0.0
        %914 = vmatprep.subr.mxu0 0.0
        %915 = vmatpush1.msra.mxu0 0.0
        %916 = vmatprep.subr.mxu0 0.0
        %917 = vmatpush1.msra.mxu0 0.0
        %918 = vmatprep.subr.mxu0 0.0
        %919 = vmatpush1.msra.mxu0 0.0
        %920 = vmatprep.subr.mxu0 0.0
        %921 = vmatpush1.msra.mxu0 0.0
        %922 = vmatprep.subr.mxu0 0.0
        %923 = vmatpush1.msra.mxu0 0.0
        %924 = vmatprep.subr.mxu0 0.0
        %925 = vmatpush1.msra.mxu0 0.0
        %926 = vmatprep.subr.mxu0 0.0
        %927 = vmatpush1.msra.mxu0 0.0
        %928 = vmatprep.subr.mxu0 0.0
        %929 = vmatpush1.msra.mxu0 0.0
        %930 = vmatprep.subr.mxu0 0.0
        %931 = vmatpush1.msra.mxu0 0.0
        %932 = vmatprep.subr.mxu0 0.0
        %933 = vmatpush1.msra.mxu0 0.0
        %934 = vmatprep.subr.mxu0 0.0
        %935 = vmatpush1.msra.mxu0 0.0
        %936 = vmatprep.subr.mxu0 0.0
        %937 = vmatpush1.msra.mxu0 0.0
        %938 = vmatprep.subr.mxu0 0.0
        %939 = vmatpush1.msra.mxu0 0.0
        %940 = vmatprep.subr.mxu0 0.0
        %941 = vmatpush1.msra.mxu0 0.0
        %942 = vmatprep.subr.mxu0 0.0
        %943 = vmatpush1.msra.mxu0 0.0
        %944 = vmatprep.subr.mxu0 0.0
        %945 = vmatpush1.msra.mxu0 0.0
        %946 = vmatprep.subr.mxu0 0.0
        %947 = vmatpush1.msra.mxu0 0.0
        %948 = vmatprep.subr.mxu0 0.0
        %949 = vmatpush1.msra.mxu0 0.0
        %950 = vmatprep.subr.mxu0 0.0
        %951 = vmatpush1.msra.mxu0 0.0
        %952 = vmatprep.subr.mxu0 0.0
        %953 = vmatpush1.msra.mxu0 0.0
        %954 = vmatprep.subr.mxu0 0.0
        %955 = vmatpush1.msra.mxu0 0.0
        %956 = vmatprep.subr.mxu0 0.0
        %957 = vmatpush1.msra.mxu0 0.0
        %958 = vmatprep.mubr.f32.mxu0 0.0
        %959 = vmatmul.mubr.f32.gmra.mrb[0].mxu0 %v892
        %v960 = vpop.f32.mrb[0].mxu0
        %v961 = vadd.f32 %v889, %v960
        %v962 = vpop.f32.mrb[0].mxu0
        %v963 = vadd.f32 %v889, %v962
        %964 = vdwg.mxu0
        %965 = vmatprep.subr.mxu0 %v772
        %966 = vmatpush1.msra.mxu0 %v771
        %967 = vmatprep.subr.mxu0 %v788
        %968 = vmatpush1.msra.mxu0 %v787
        %969 = vmatprep.subr.mxu0 %v804
        %970 = vmatpush1.msra.mxu0 %v803
        %971 = vmatprep.subr.mxu0 %v820
        %972 = vmatpush1.msra.mxu0 %v819
        %973 = vmatprep.subr.mxu0 %v755
        %974 = vmatpush1.msra.mxu0 %v754
        %975 = vmatprep.subr.mxu0 %v836
        %976 = vmatpush1.msra.mxu0 %v835
        %977 = vmatprep.subr.mxu0 %v852
        %978 = vmatpush1.msra.mxu0 %v851
        %979 = vmatprep.subr.mxu0 %v868
        %980 = vmatpush1.msra.mxu0 %v867
        %981 = vmatprep.subr.mxu0 %v884
        %982 = vmatpush1.msra.mxu0 %v883
        %983 = vmatprep.subr.mxu0 0.0
        %984 = vmatpush1.msra.mxu0 0.0
        %985 = vmatprep.subr.mxu0 0.0
        %986 = vmatpush1.msra.mxu0 0.0
        %987 = vmatprep.subr.mxu0 0.0
        %988 = vmatpush1.msra.mxu0 0.0
        %989 = vmatprep.subr.mxu0 0.0
        %990 = vmatpush1.msra.mxu0 0.0
        %991 = vmatprep.subr.mxu0 0.0
        %992 = vmatpush1.msra.mxu0 0.0
        %993 = vmatprep.subr.mxu0 0.0
        %994 = vmatpush1.msra.mxu0 0.0
        %995 = vmatprep.subr.mxu0 0.0
        %996 = vmatpush1.msra.mxu0 0.0
        %997 = vmatprep.subr.mxu0 0.0
        %998 = vmatpush1.msra.mxu0 0.0
        %999 = vmatprep.subr.mxu0 0.0
        %1000 = vmatpush1.msra.mxu0 0.0
        %1001 = vmatprep.subr.mxu0 0.0
        %1002 = vmatpush1.msra.mxu0 0.0
        %1003 = vmatprep.subr.mxu0 0.0
        %1004 = vmatpush1.msra.mxu0 0.0
        %1005 = vmatprep.subr.mxu0 0.0
        %1006 = vmatpush1.msra.mxu0 0.0
        %1007 = vmatprep.subr.mxu0 0.0
        %1008 = vmatpush1.msra.mxu0 0.0
        %1009 = vmatprep.subr.mxu0 0.0
        %1010 = vmatpush1.msra.mxu0 0.0
        %1011 = vmatprep.subr.mxu0 0.0
        %1012 = vmatpush1.msra.mxu0 0.0
        %1013 = vmatprep.subr.mxu0 0.0
        %1014 = vmatpush1.msra.mxu0 0.0
        %1015 = vmatprep.subr.mxu0 0.0
        %1016 = vmatpush1.msra.mxu0 0.0
        %1017 = vmatprep.subr.mxu0 0.0
        %1018 = vmatpush1.msra.mxu0 0.0
        %1019 = vmatprep.subr.mxu0 0.0
        %1020 = vmatpush1.msra.mxu0 0.0
        %1021 = vmatprep.subr.mxu0 0.0
        %1022 = vmatpush1.msra.mxu0 0.0
        %1023 = vmatprep.subr.mxu0 0.0
        %1024 = vmatpush1.msra.mxu0 0.0
        %1025 = vmatprep.subr.mxu0 0.0
        %1026 = vmatpush1.msra.mxu0 0.0
        %1027 = vmatprep.subr.mxu0 0.0
        %1028 = vmatpush1.msra.mxu0 0.0
        %1029 = vmatprep.mubr.f32.mxu0 0.0
        %1030 = vmatmul.mubr.f32.gmra.mrb[0].mxu0 %v892
        %v1031 = vpop.f32.mrb[0].mxu0
        %v1032 = vadd.f32 %v889, %v1031
        %v1033 = vpop.f32.mrb[0].mxu0
        %v1034 = vadd.f32 %v889, %v1033
        %1035 = vdwg.mxu0
        %v1036 = vadd.f32 %v961, %v270
        %v1037 = vadd.f32 %v963, %v271
        %v1038 = vadd.f32 %v1032, %v272
        %v1039 = vadd.f32 %v1034, %v273
        %v1040 = vmax.f32 %v1036, 0.0
        %v1041 = vmax.f32 %v1037, 0.0
        %v1042 = vmax.f32 %v1038, 0.0
        %v1043 = vmax.f32 %v1039, 0.0
        %1044 = vst [vmem:[%s267] sm:$0xff] %v1040
        %1045 = vst [vmem:[%s267 + $0x8] sm:$0xff] %v1041
        %1046 = vst [vmem:[%s267 + $0x10] sm:$0xff] %v1042
        %1047 = vst [vmem:[%s267 + $0x18] sm:$0xff] %v1043
        %s1048 = sand.u32 %s162, 1
        %s1049 = scalar_lea.sflag [#allocation4], %s1048
        %s1050 = sand.u32 %s162, 1
        %s1051 = smul.addr %s1050, 32
        %s1052 = scalar_lea.vmem [#allocation5], %s1051
        // Predicated region
        $region49: #{tpu_custom_call.1} parent=43 // pred_check
          %p1053 = pneg %p172
        $region50: #{tpu_custom_call.1} parent=43 // pred_check_branch
          %1055 = sbr.rel (%p1053) target = $region52
        $region51: #{tpu_custom_call.1} parent=43 // pred_region
          %s1056 = smul.u32 4, %s23
          %s1058 = ssub.s32 512, 512
          %1059 = vsyncadd %s1049, %s1058
          %s1060 = smul.addr %s1056, 128
          %s1061 = scalar_lea.hbm %s6, %s1060
          %s1063 = sshll.u32 %s1052, 4
          %s1064 = int_to_ptr.vmem [resolvable:$true] %s1063
          %1066 = dma.vmem_to_hbm [thread:$0]  %s1064, 512, %s1061, %s1049
        $region52: #{tpu_custom_call.1} parent=43 // pred_fallthru
          _
      $region44: #{tpu_custom_call.1} parent=5 // pred_fallthru
        _
      %p1067 = scmp.le.s32.totalorder 2, %s18
      // Predicated region
      $region53: #{tpu_custom_call.1} parent=5 // pred_check
        %p1068 = pneg %p1067
      $region54: #{tpu_custom_call.1} parent=5 // pred_check_branch
        %1070 = sbr.rel (%p1068) target = $region56
      $region55: #{tpu_custom_call.1} parent=5 // pred_region
        %s1071 = ssub.s32 %s18, 2
        // Predicated region
        $region57: #{tpu_custom_call.1} parent=55 // pred_check
          %p1072 = pneg %p178
        $region58: #{tpu_custom_call.1} parent=55 // pred_check_branch
          %1074 = sbr.rel (%p1072) target = $region60
        $region59: #{tpu_custom_call.1} parent=55 // pred_region
          %s1075 = sand.u32 %s163, 1
          %s1076 = scalar_lea.sflag [#allocation4], %s1075
          %s1077 = sand.u32 %s163, 1
          %s1078 = smul.addr %s1077, 32
          %s1079 = scalar_lea.vmem [#allocation5], %s1078
          %1080 = dma.done %s1076, 512
        $region60: #{tpu_custom_call.1} parent=55 // pred_fallthru
          _
      $region56: #{tpu_custom_call.1} parent=5 // pred_fallthru
        _
    $region6: #{tpu_custom_call.1} parent=1 // loop_footer
      %s22 = sadd.s32 1, %s18
    $region7: #{tpu_custom_call.1} parent=1 // loop_footer_branch
      %17 = sbr.rel target = $region3
    $region8: #{tpu_custom_call.1} parent=1 // loop_exit
      _
    %1081 = vsyncpa [#allocation3], 1
    %s1082 = scalar_lea.sflag [#allocation3], 1
    %1083 = vsyncpa %s1082, 1
    %1084 = vsyncpa [#allocation4], 1
    %s1085 = scalar_lea.sflag [#allocation4], 1
    %1086 = vsyncpa %s1085, 1

</llo_original>
